<compile_context>
chip_gen: v7x
topology: tpu7x:2x2x1
jax: 0.10.0
libtpu: 0.0.40
codegen_flags: <defaults>
</compile_context>

<pallas_src>
import functools

import jax
import jax.numpy as jnp
from jax.experimental import pallas as pl
from jax.experimental.pallas import tpu as pltpu

# ----------------------------- module config -------------------------------
NC = 15                    # num classes -> no = nc + 5 = 20
NO = NC + 5
ANCHORS = [[10, 13, 16, 30, 33, 23],
           [30, 61, 62, 45, 59, 119],
           [116, 90, 156, 198, 373, 326]]
STRIDES = [8.0, 16.0, 32.0]          # self.stride (set deterministically)
NL = len(ANCHORS)                    # number of detection layers
NA = len(ANCHORS[0]) // 2            # anchors per layer
C = NA * NO                          # channels per layer (60)
# Detect is run in eval mode (training=False, export=False) -> inference branch.


# ------------------------------ Pallas kernel ------------------------------
def _divmod_const(x, d):
    """(x // d, x % d) for a compile-time positive int d (shift/and if pow2)."""
    if d & (d - 1) == 0:
        sh = d.bit_length() - 1
        return x >> sh, x & (d - 1)
    q = x // d                         # TODO(synk): non-pow2 feature maps rely on
    return q, x - q * d                #             Mosaic strength-reducing s32 //


def _decode_layer(x_ref, y_ref, stride, anchors_flat, nx):
    """Decode one layer in channel-major layout. Block = (1, C, ny*nx)."""
    v = x_ref[...]                                            # (1, C, S) f32
    s = jax.nn.sigmoid(v)

    ch = jax.lax.broadcasted_iota(jnp.int32, v.shape, dimension=1)   # channel
    lane = jax.lax.broadcasted_iota(jnp.int32, v.shape, dimension=2)  # spatial

    # channel -> per-box feature index k (0..NO-1) without integer div by 20
    a_base = jnp.where(ch < NO, 0, jnp.where(ch < 2 * NO, NO, 2 * NO))
    k = ch - a_base

    # spatial lane -> (grid y, grid x)
    gy_i, gx_i = _divmod_const(lane, nx)
    g = jnp.where(k == 0, gx_i.astype(jnp.float32), gy_i.astype(jnp.float32))

    # xy = (2*sigmoid - 0.5 + g) * stride   (stride is a power of 2 -> exact fold)
    xy = s * (2.0 * stride) + (g - 0.5) * stride

    # wh = (2*sigmoid)^2 * anchor = sigmoid^2 * (4*anchor)
    w0, h0, w1, h1, w2, h2 = [4.0 * float(a) for a in anchors_flat]
    w_sel = jnp.where(ch < NO, w0, jnp.where(ch < 2 * NO, w1, w2))
    h_sel = jnp.where(ch < NO, h0, jnp.where(ch < 2 * NO, h1, h2))
    wh = s * s * jnp.where(k == 2, w_sel, h_sel)

    y_ref[...] = jnp.where(k < 2, xy, jnp.where(k < 4, wh, s))


def _detect_kernel(layer_cfg, *refs):
    n = len(layer_cfg)
    x_refs, y_refs = refs[:n], refs[n:]
    for (stride, anchors_flat, nx), xr, yr in zip(layer_cfg, x_refs, y_refs):
        _decode_layer(xr, yr, stride, anchors_flat, nx)


# ------------------------------- JAX glue ----------------------------------
def detect_forward(x_list):
    """Inference-mode Detect.forward. Returns (cat(z, 1), x_permuted_list)."""
    bs = x_list[0].shape[0]
    spatial = [(xi.shape[2], xi.shape[3]) for xi in x_list]
    # Free reshape: keep native channel-major layout, spatial flattened to lanes.
    flats = [xi.reshape(bs, C, ny * nx) for xi, (ny, nx) in zip(x_list, spatial)]

    layer_cfg = tuple(
        (float(STRIDES[i]), tuple(ANCHORS[i]), int(spatial[i][1]))
        for i in range(NL)
    )

    outs = pl.pallas_call(
        functools.partial(_detect_kernel, layer_cfg),
        out_shape=[jax.ShapeDtypeStruct(f.shape, jnp.float32) for f in flats],
        grid=(bs,),
        in_specs=[pl.BlockSpec((1, C, f.shape[2]), lambda b: (b, 0, 0))
                  for f in flats],
        out_specs=[pl.BlockSpec((1, C, f.shape[2]), lambda b: (b, 0, 0))
                   for f in flats],
        compiler_params=pltpu.CompilerParams(
            dimension_semantics=("parallel",)),
    )(*flats)

    # x_out: the permuted (not decoded) activations the torch module returns.
    x_out = [xi.reshape(bs, NA, NO, ny, nx).transpose(0, 1, 3, 4, 2)
             for xi, (ny, nx) in zip(x_list, spatial)]

    # z: decoded boxes, re-laid-out to (bs, na*ny*nx, no) and concatenated.
    z = [d.reshape(bs, NA, NO, ny, nx).transpose(0, 1, 3, 4, 2)
          .reshape(bs, NA * ny * nx, NO)
         for d, (ny, nx) in zip(outs, spatial)]
    return jnp.concatenate(z, axis=1), x_out


# ------------------------- pure-JAX reference ------------------------------
def _make_grid(nx, ny):
    yv, xv = jnp.meshgrid(jnp.arange(ny), jnp.arange(nx), indexing="ij")
    return jnp.stack((xv, yv), axis=2).astype(jnp.float32)   # (ny, nx, 2)


def detect_reference(x_list):
    anchors = jnp.asarray(ANCHORS, jnp.float32).reshape(NL, -1, 2)
    anchor_grid = anchors.reshape(NL, 1, NA, 1, 1, 2)
    z = []
    for i, xi in enumerate(x_list):
        bs, _, ny, nx = xi.shape
        xp = xi.reshape(bs, NA, NO, ny, nx).transpose(0, 1, 3, 4, 2)
        y = jax.nn.sigmoid(xp)
        grid = _make_grid(nx, ny).reshape(1, 1, ny, nx, 2)
        xy = (y[..., 0:2] * 2.0 - 0.5 + grid) * STRIDES[i]
        wh = (y[..., 2:4] * 2.0) ** 2 * anchor_grid[i]
        y = jnp.concatenate([xy, wh, y[..., 4:]], axis=-1)
        z.append(y.reshape(bs, -1, NO))
    return jnp.concatenate(z, axis=1)


# --------------------------------- main -------------------------------------
if __name__ == "__main__":
    key = jax.random.PRNGKey(0)
    bs = 2
    spatial = [16, 8, 4]                       # ny = nx per detection layer
    keys = jax.random.split(key, NL)
    x_list = [
        jax.random.normal(keys[i], (bs, NA * NO, s, s), dtype=jnp.float32)
        for i, s in enumerate(spatial)
    ]

    z, x_out = detect_forward([x for x in x_list])
    z = jax.block_until_ready(z)
    for xo in x_out:
        jax.block_until_ready(xo)

    z_ref = jax.block_until_ready(detect_reference(x_list))

    total_boxes = sum(NA * s * s for s in spatial)
    assert z.shape == (bs, total_boxes, NO), z.shape
    assert all(x_out[i].shape == (bs, NA, spatial[i], spatial[i], NO)
               for i in range(NL))
    assert jnp.allclose(z, z_ref, rtol=1e-5, atol=1e-5), \
        float(jnp.max(jnp.abs(z - z_ref)))

    print("KERNEL_OK")
</pallas_src>

<mosaic_0001>
module attributes {stable_mosaic.version = 11 : i64} {
  func.func @_detect_kernel(%arg0: i32, %arg1: memref<1x60x256xf32, #tpu.memory_space<vmem>>, %arg2: memref<1x60x64xf32, #tpu.memory_space<vmem>>, %arg3: memref<1x60x16xf32, #tpu.memory_space<vmem>>, %arg4: memref<1x60x256xf32, #tpu.memory_space<vmem>>, %arg5: memref<1x60x64xf32, #tpu.memory_space<vmem>>, %arg6: memref<1x60x16xf32, #tpu.memory_space<vmem>>) attributes {dimension_semantics = [#tpu.dimension_semantics<parallel>], iteration_bounds = array<i64: 2>, scalar_prefetch = 0 : i64, scratch_operands = 0 : i64, tpu.core_type = #tpu.core_type<tc>, window_params = [{transform_indices = @transform_0, window_bounds = array<i64: 1, 60, 256>}, {transform_indices = @transform_1, window_bounds = array<i64: 1, 60, 64>}, {transform_indices = @transform_2, window_bounds = array<i64: 1, 60, 16>}, {transform_indices = @transform_3, window_bounds = array<i64: 1, 60, 256>}, {transform_indices = @transform_4, window_bounds = array<i64: 1, 60, 64>}, {transform_indices = @transform_5, window_bounds = array<i64: 1, 60, 16>}]} {
    %c0 = arith.constant 0 : index
    %c0_0 = arith.constant 0 : index
    %c0_1 = arith.constant 0 : index
    %0 = vector.load %arg1[%c0, %c0_0, %c0_1] : memref<1x60x256xf32, #tpu.memory_space<vmem>>, vector<1x60x256xf32>
    %1 = arith.negf %0 : vector<1x60x256xf32>
    %2 = math.exp %1 : vector<1x60x256xf32>
    %cst = arith.constant 1.000000e+00 : f32
    %3 = vector.broadcast %cst : f32 to vector<1x60x256xf32>
    %4 = arith.addf %3, %2 : vector<1x60x256xf32>
    %5 = arith.divf %3, %4 : vector<1x60x256xf32>
    %6 = tpu.iota {dimensions = array<i32: 1>} : vector<1x60x256xi32>
    %7 = tpu.iota {dimensions = array<i32: 2>} : vector<1x60x256xi32>
    %c20_i32 = arith.constant 20 : i32
    %8 = vector.broadcast %c20_i32 : i32 to vector<1x60x256xi32>
    %9 = arith.cmpi slt, %6, %8 : vector<1x60x256xi32>
    %c40_i32 = arith.constant 40 : i32
    %10 = vector.broadcast %c40_i32 : i32 to vector<1x60x256xi32>
    %11 = arith.cmpi slt, %6, %10 : vector<1x60x256xi32>
    %c20_i32_2 = arith.constant 20 : i32
    %c40_i32_3 = arith.constant 40 : i32
    %12 = vector.broadcast %c20_i32_2 : i32 to vector<1x60x256xi32>
    %13 = vector.broadcast %c40_i32_3 : i32 to vector<1x60x256xi32>
    %14 = arith.select %11, %12, %13 : vector<1x60x256xi1>, vector<1x60x256xi32>
    %c0_i32 = arith.constant 0 : i32
    %15 = vector.broadcast %c0_i32 : i32 to vector<1x60x256xi32>
    %16 = arith.select %9, %15, %14 : vector<1x60x256xi1>, vector<1x60x256xi32>
    %17 = arith.subi %6, %16 : vector<1x60x256xi32>
    %c4_i32 = arith.constant 4 : i32
    %18 = vector.broadcast %c4_i32 : i32 to vector<1x60x256xi32>
    %19 = arith.shrsi %7, %18 : vector<1x60x256xi32>
    %c15_i32 = arith.constant 15 : i32
    %20 = vector.broadcast %c15_i32 : i32 to vector<1x60x256xi32>
    %21 = arith.andi %7, %20 : vector<1x60x256xi32>
    %c0_i32_4 = arith.constant 0 : i32
    %22 = vector.broadcast %c0_i32_4 : i32 to vector<1x60x256xi32>
    %23 = arith.cmpi eq, %17, %22 : vector<1x60x256xi32>
    %24 = arith.sitofp %21 : vector<1x60x256xi32> to vector<1x60x256xf32>
    %25 = arith.sitofp %19 : vector<1x60x256xi32> to vector<1x60x256xf32>
    %26 = arith.select %23, %24, %25 : vector<1x60x256xi1>, vector<1x60x256xf32>
    %cst_5 = arith.constant 1.600000e+01 : f32
    %27 = vector.broadcast %cst_5 : f32 to vector<1x60x256xf32>
    %28 = arith.mulf %5, %27 : vector<1x60x256xf32>
    %cst_6 = arith.constant 5.000000e-01 : f32
    %29 = vector.broadcast %cst_6 : f32 to vector<1x60x256xf32>
    %30 = arith.subf %26, %29 : vector<1x60x256xf32>
    %cst_7 = arith.constant 8.000000e+00 : f32
    %31 = vector.broadcast %cst_7 : f32 to vector<1x60x256xf32>
    %32 = arith.mulf %30, %31 : vector<1x60x256xf32>
    %33 = arith.addf %28, %32 : vector<1x60x256xf32>
    %c20_i32_8 = arith.constant 20 : i32
    %34 = vector.broadcast %c20_i32_8 : i32 to vector<1x60x256xi32>
    %35 = arith.cmpi slt, %6, %34 : vector<1x60x256xi32>
    %c40_i32_9 = arith.constant 40 : i32
    %36 = vector.broadcast %c40_i32_9 : i32 to vector<1x60x256xi32>
    %37 = arith.cmpi slt, %6, %36 : vector<1x60x256xi32>
    %cst_10 = arith.constant 6.400000e+01 : f32
    %cst_11 = arith.constant 1.320000e+02 : f32
    %38 = vector.broadcast %cst_10 : f32 to vector<1x60x256xf32>
    %39 = vector.broadcast %cst_11 : f32 to vector<1x60x256xf32>
    %40 = arith.select %37, %38, %39 : vector<1x60x256xi1>, vector<1x60x256xf32>
    %cst_12 = arith.constant 4.000000e+01 : f32
    %41 = vector.broadcast %cst_12 : f32 to vector<1x60x256xf32>
    %42 = arith.select %35, %41, %40 : vector<1x60x256xi1>, vector<1x60x256xf32>
    %c20_i32_13 = arith.constant 20 : i32
    %43 = vector.broadcast %c20_i32_13 : i32 to vector<1x60x256xi32>
    %44 = arith.cmpi slt, %6, %43 : vector<1x60x256xi32>
    %c40_i32_14 = arith.constant 40 : i32
    %45 = vector.broadcast %c40_i32_14 : i32 to vector<1x60x256xi32>
    %46 = arith.cmpi slt, %6, %45 : vector<1x60x256xi32>
    %cst_15 = arith.constant 1.200000e+02 : f32
    %cst_16 = arith.constant 9.200000e+01 : f32
    %47 = vector.broadcast %cst_15 : f32 to vector<1x60x256xf32>
    %48 = vector.broadcast %cst_16 : f32 to vector<1x60x256xf32>
    %49 = arith.select %46, %47, %48 : vector<1x60x256xi1>, vector<1x60x256xf32>
    %cst_17 = arith.constant 5.200000e+01 : f32
    %50 = vector.broadcast %cst_17 : f32 to vector<1x60x256xf32>
    %51 = arith.select %44, %50, %49 : vector<1x60x256xi1>, vector<1x60x256xf32>
    %52 = arith.mulf %5, %5 : vector<1x60x256xf32>
    %c2_i32 = arith.constant 2 : i32
    %53 = vector.broadcast %c2_i32 : i32 to vector<1x60x256xi32>
    %54 = arith.cmpi eq, %17, %53 : vector<1x60x256xi32>
    %55 = arith.select %54, %42, %51 : vector<1x60x256xi1>, vector<1x60x256xf32>
    %56 = arith.mulf %52, %55 : vector<1x60x256xf32>
    %c2_i32_18 = arith.constant 2 : i32
    %57 = vector.broadcast %c2_i32_18 : i32 to vector<1x60x256xi32>
    %58 = arith.cmpi slt, %17, %57 : vector<1x60x256xi32>
    %c4_i32_19 = arith.constant 4 : i32
    %59 = vector.broadcast %c4_i32_19 : i32 to vector<1x60x256xi32>
    %60 = arith.cmpi slt, %17, %59 : vector<1x60x256xi32>
    %61 = arith.select %60, %56, %5 : vector<1x60x256xi1>, vector<1x60x256xf32>
    %62 = arith.select %58, %33, %61 : vector<1x60x256xi1>, vector<1x60x256xf32>
    %c0_20 = arith.constant 0 : index
    %c0_21 = arith.constant 0 : index
    %c0_22 = arith.constant 0 : index
    %63 = vector.load %arg4[%c0_20, %c0_21, %c0_22] : memref<1x60x256xf32, #tpu.memory_space<vmem>>, vector<1x60x256xf32>
    tpu.vector_store %arg4[%c0_20, %c0_21, %c0_22], %62 {strides = array<i32>} : memref<1x60x256xf32, #tpu.memory_space<vmem>>, vector<1x60x256xf32>,
    %c0_23 = arith.constant 0 : index
    %c0_24 = arith.constant 0 : index
    %c0_25 = arith.constant 0 : index
    %64 = vector.load %arg2[%c0_23, %c0_24, %c0_25] : memref<1x60x64xf32, #tpu.memory_space<vmem>>, vector<1x60x64xf32>
    %65 = arith.negf %64 : vector<1x60x64xf32>
    %66 = math.exp %65 : vector<1x60x64xf32>
    %cst_26 = arith.constant 1.000000e+00 : f32
    %67 = vector.broadcast %cst_26 : f32 to vector<1x60x64xf32>
    %68 = arith.addf %67, %66 : vector<1x60x64xf32>
    %69 = arith.divf %67, %68 : vector<1x60x64xf32>
    %70 = tpu.iota {dimensions = array<i32: 1>} : vector<1x60x64xi32>
    %71 = tpu.iota {dimensions = array<i32: 2>} : vector<1x60x64xi32>
    %c20_i32_27 = arith.constant 20 : i32
    %72 = vector.broadcast %c20_i32_27 : i32 to vector<1x60x64xi32>
    %73 = arith.cmpi slt, %70, %72 : vector<1x60x64xi32>
    %c40_i32_28 = arith.constant 40 : i32
    %74 = vector.broadcast %c40_i32_28 : i32 to vector<1x60x64xi32>
    %75 = arith.cmpi slt, %70, %74 : vector<1x60x64xi32>
    %c20_i32_29 = arith.constant 20 : i32
    %c40_i32_30 = arith.constant 40 : i32
    %76 = vector.broadcast %c20_i32_29 : i32 to vector<1x60x64xi32>
    %77 = vector.broadcast %c40_i32_30 : i32 to vector<1x60x64xi32>
    %78 = arith.select %75, %76, %77 : vector<1x60x64xi1>, vector<1x60x64xi32>
    %c0_i32_31 = arith.constant 0 : i32
    %79 = vector.broadcast %c0_i32_31 : i32 to vector<1x60x64xi32>
    %80 = arith.select %73, %79, %78 : vector<1x60x64xi1>, vector<1x60x64xi32>
    %81 = arith.subi %70, %80 : vector<1x60x64xi32>
    %c3_i32 = arith.constant 3 : i32
    %82 = vector.broadcast %c3_i32 : i32 to vector<1x60x64xi32>
    %83 = arith.shrsi %71, %82 : vector<1x60x64xi32>
    %c7_i32 = arith.constant 7 : i32
    %84 = vector.broadcast %c7_i32 : i32 to vector<1x60x64xi32>
    %85 = arith.andi %71, %84 : vector<1x60x64xi32>
    %c0_i32_32 = arith.constant 0 : i32
    %86 = vector.broadcast %c0_i32_32 : i32 to vector<1x60x64xi32>
    %87 = arith.cmpi eq, %81, %86 : vector<1x60x64xi32>
    %88 = arith.sitofp %85 : vector<1x60x64xi32> to vector<1x60x64xf32>
    %89 = arith.sitofp %83 : vector<1x60x64xi32> to vector<1x60x64xf32>
    %90 = arith.select %87, %88, %89 : vector<1x60x64xi1>, vector<1x60x64xf32>
    %cst_33 = arith.constant 3.200000e+01 : f32
    %91 = vector.broadcast %cst_33 : f32 to vector<1x60x64xf32>
    %92 = arith.mulf %69, %91 : vector<1x60x64xf32>
    %cst_34 = arith.constant 5.000000e-01 : f32
    %93 = vector.broadcast %cst_34 : f32 to vector<1x60x64xf32>
    %94 = arith.subf %90, %93 : vector<1x60x64xf32>
    %cst_35 = arith.constant 1.600000e+01 : f32
    %95 = vector.broadcast %cst_35 : f32 to vector<1x60x64xf32>
    %96 = arith.mulf %94, %95 : vector<1x60x64xf32>
    %97 = arith.addf %92, %96 : vector<1x60x64xf32>
    %c20_i32_36 = arith.constant 20 : i32
    %98 = vector.broadcast %c20_i32_36 : i32 to vector<1x60x64xi32>
    %99 = arith.cmpi slt, %70, %98 : vector<1x60x64xi32>
    %c40_i32_37 = arith.constant 40 : i32
    %100 = vector.broadcast %c40_i32_37 : i32 to vector<1x60x64xi32>
    %101 = arith.cmpi slt, %70, %100 : vector<1x60x64xi32>
    %cst_38 = arith.constant 2.480000e+02 : f32
    %cst_39 = arith.constant 2.360000e+02 : f32
    %102 = vector.broadcast %cst_38 : f32 to vector<1x60x64xf32>
    %103 = vector.broadcast %cst_39 : f32 to vector<1x60x64xf32>
    %104 = arith.select %101, %102, %103 : vector<1x60x64xi1>, vector<1x60x64xf32>
    %cst_40 = arith.constant 1.200000e+02 : f32
    %105 = vector.broadcast %cst_40 : f32 to vector<1x60x64xf32>
    %106 = arith.select %99, %105, %104 : vector<1x60x64xi1>, vector<1x60x64xf32>
    %c20_i32_41 = arith.constant 20 : i32
    %107 = vector.broadcast %c20_i32_41 : i32 to vector<1x60x64xi32>
    %108 = arith.cmpi slt, %70, %107 : vector<1x60x64xi32>
    %c40_i32_42 = arith.constant 40 : i32
    %109 = vector.broadcast %c40_i32_42 : i32 to vector<1x60x64xi32>
    %110 = arith.cmpi slt, %70, %109 : vector<1x60x64xi32>
    %cst_43 = arith.constant 1.800000e+02 : f32
    %cst_44 = arith.constant 4.760000e+02 : f32
    %111 = vector.broadcast %cst_43 : f32 to vector<1x60x64xf32>
    %112 = vector.broadcast %cst_44 : f32 to vector<1x60x64xf32>
    %113 = arith.select %110, %111, %112 : vector<1x60x64xi1>, vector<1x60x64xf32>
    %cst_45 = arith.constant 2.440000e+02 : f32
    %114 = vector.broadcast %cst_45 : f32 to vector<1x60x64xf32>
    %115 = arith.select %108, %114, %113 : vector<1x60x64xi1>, vector<1x60x64xf32>
    %116 = arith.mulf %69, %69 : vector<1x60x64xf32>
    %c2_i32_46 = arith.constant 2 : i32
    %117 = vector.broadcast %c2_i32_46 : i32 to vector<1x60x64xi32>
    %118 = arith.cmpi eq, %81, %117 : vector<1x60x64xi32>
    %119 = arith.select %118, %106, %115 : vector<1x60x64xi1>, vector<1x60x64xf32>
    %120 = arith.mulf %116, %119 : vector<1x60x64xf32>
    %c2_i32_47 = arith.constant 2 : i32
    %121 = vector.broadcast %c2_i32_47 : i32 to vector<1x60x64xi32>
    %122 = arith.cmpi slt, %81, %121 : vector<1x60x64xi32>
    %c4_i32_48 = arith.constant 4 : i32
    %123 = vector.broadcast %c4_i32_48 : i32 to vector<1x60x64xi32>
    %124 = arith.cmpi slt, %81, %123 : vector<1x60x64xi32>
    %125 = arith.select %124, %120, %69 : vector<1x60x64xi1>, vector<1x60x64xf32>
    %126 = arith.select %122, %97, %125 : vector<1x60x64xi1>, vector<1x60x64xf32>
    %c0_49 = arith.constant 0 : index
    %c0_50 = arith.constant 0 : index
    %c0_51 = arith.constant 0 : index
    %127 = vector.load %arg5[%c0_49, %c0_50, %c0_51] : memref<1x60x64xf32, #tpu.memory_space<vmem>>, vector<1x60x64xf32>
    tpu.vector_store %arg5[%c0_49, %c0_50, %c0_51], %126 {strides = array<i32>} : memref<1x60x64xf32, #tpu.memory_space<vmem>>, vector<1x60x64xf32>,
    %c0_52 = arith.constant 0 : index
    %c0_53 = arith.constant 0 : index
    %c0_54 = arith.constant 0 : index
    %128 = vector.load %arg3[%c0_52, %c0_53, %c0_54] : memref<1x60x16xf32, #tpu.memory_space<vmem>>, vector<1x60x16xf32>
    %129 = arith.negf %128 : vector<1x60x16xf32>
    %130 = math.exp %129 : vector<1x60x16xf32>
    %cst_55 = arith.constant 1.000000e+00 : f32
    %131 = vector.broadcast %cst_55 : f32 to vector<1x60x16xf32>
    %132 = arith.addf %131, %130 : vector<1x60x16xf32>
    %133 = arith.divf %131, %132 : vector<1x60x16xf32>
    %134 = tpu.iota {dimensions = array<i32: 1>} : vector<1x60x16xi32>
    %135 = tpu.iota {dimensions = array<i32: 2>} : vector<1x60x16xi32>
    %c20_i32_56 = arith.constant 20 : i32
    %136 = vector.broadcast %c20_i32_56 : i32 to vector<1x60x16xi32>
    %137 = arith.cmpi slt, %134, %136 : vector<1x60x16xi32>
    %c40_i32_57 = arith.constant 40 : i32
    %138 = vector.broadcast %c40_i32_57 : i32 to vector<1x60x16xi32>
    %139 = arith.cmpi slt, %134, %138 : vector<1x60x16xi32>
    %c20_i32_58 = arith.constant 20 : i32
    %c40_i32_59 = arith.constant 40 : i32
    %140 = vector.broadcast %c20_i32_58 : i32 to vector<1x60x16xi32>
    %141 = vector.broadcast %c40_i32_59 : i32 to vector<1x60x16xi32>
    %142 = arith.select %139, %140, %141 : vector<1x60x16xi1>, vector<1x60x16xi32>
    %c0_i32_60 = arith.constant 0 : i32
    %143 = vector.broadcast %c0_i32_60 : i32 to vector<1x60x16xi32>
    %144 = arith.select %137, %143, %142 : vector<1x60x16xi1>, vector<1x60x16xi32>
    %145 = arith.subi %134, %144 : vector<1x60x16xi32>
    %c2_i32_61 = arith.constant 2 : i32
    %146 = vector.broadcast %c2_i32_61 : i32 to vector<1x60x16xi32>
    %147 = arith.shrsi %135, %146 : vector<1x60x16xi32>
    %c3_i32_62 = arith.constant 3 : i32
    %148 = vector.broadcast %c3_i32_62 : i32 to vector<1x60x16xi32>
    %149 = arith.andi %135, %148 : vector<1x60x16xi32>
    %c0_i32_63 = arith.constant 0 : i32
    %150 = vector.broadcast %c0_i32_63 : i32 to vector<1x60x16xi32>
    %151 = arith.cmpi eq, %145, %150 : vector<1x60x16xi32>
    %152 = arith.sitofp %149 : vector<1x60x16xi32> to vector<1x60x16xf32>
    %153 = arith.sitofp %147 : vector<1x60x16xi32> to vector<1x60x16xf32>
    %154 = arith.select %151, %152, %153 : vector<1x60x16xi1>, vector<1x60x16xf32>
    %cst_64 = arith.constant 6.400000e+01 : f32
    %155 = vector.broadcast %cst_64 : f32 to vector<1x60x16xf32>
    %156 = arith.mulf %133, %155 : vector<1x60x16xf32>
    %cst_65 = arith.constant 5.000000e-01 : f32
    %157 = vector.broadcast %cst_65 : f32 to vector<1x60x16xf32>
    %158 = arith.subf %154, %157 : vector<1x60x16xf32>
    %cst_66 = arith.constant 3.200000e+01 : f32
    %159 = vector.broadcast %cst_66 : f32 to vector<1x60x16xf32>
    %160 = arith.mulf %158, %159 : vector<1x60x16xf32>
    %161 = arith.addf %156, %160 : vector<1x60x16xf32>
    %c20_i32_67 = arith.constant 20 : i32
    %162 = vector.broadcast %c20_i32_67 : i32 to vector<1x60x16xi32>
    %163 = arith.cmpi slt, %134, %162 : vector<1x60x16xi32>
    %c40_i32_68 = arith.constant 40 : i32
    %164 = vector.broadcast %c40_i32_68 : i32 to vector<1x60x16xi32>
    %165 = arith.cmpi slt, %134, %164 : vector<1x60x16xi32>
    %cst_69 = arith.constant 6.240000e+02 : f32
    %cst_70 = arith.constant 1.492000e+03 : f32
    %166 = vector.broadcast %cst_69 : f32 to vector<1x60x16xf32>
    %167 = vector.broadcast %cst_70 : f32 to vector<1x60x16xf32>
    %168 = arith.select %165, %166, %167 : vector<1x60x16xi1>, vector<1x60x16xf32>
    %cst_71 = arith.constant 4.640000e+02 : f32
    %169 = vector.broadcast %cst_71 : f32 to vector<1x60x16xf32>
    %170 = arith.select %163, %169, %168 : vector<1x60x16xi1>, vector<1x60x16xf32>
    %c20_i32_72 = arith.constant 20 : i32
    %171 = vector.broadcast %c20_i32_72 : i32 to vector<1x60x16xi32>
    %172 = arith.cmpi slt, %134, %171 : vector<1x60x16xi32>
    %c40_i32_73 = arith.constant 40 : i32
    %173 = vector.broadcast %c40_i32_73 : i32 to vector<1x60x16xi32>
    %174 = arith.cmpi slt, %134, %173 : vector<1x60x16xi32>
    %cst_74 = arith.constant 7.920000e+02 : f32
    %cst_75 = arith.constant 1.304000e+03 : f32
    %175 = vector.broadcast %cst_74 : f32 to vector<1x60x16xf32>
    %176 = vector.broadcast %cst_75 : f32 to vector<1x60x16xf32>
    %177 = arith.select %174, %175, %176 : vector<1x60x16xi1>, vector<1x60x16xf32>
    %cst_76 = arith.constant 3.600000e+02 : f32
    %178 = vector.broadcast %cst_76 : f32 to vector<1x60x16xf32>
    %179 = arith.select %172, %178, %177 : vector<1x60x16xi1>, vector<1x60x16xf32>
    %180 = arith.mulf %133, %133 : vector<1x60x16xf32>
    %c2_i32_77 = arith.constant 2 : i32
    %181 = vector.broadcast %c2_i32_77 : i32 to vector<1x60x16xi32>
    %182 = arith.cmpi eq, %145, %181 : vector<1x60x16xi32>
    %183 = arith.select %182, %170, %179 : vector<1x60x16xi1>, vector<1x60x16xf32>
    %184 = arith.mulf %180, %183 : vector<1x60x16xf32>
    %c2_i32_78 = arith.constant 2 : i32
    %185 = vector.broadcast %c2_i32_78 : i32 to vector<1x60x16xi32>
    %186 = arith.cmpi slt, %145, %185 : vector<1x60x16xi32>
    %c4_i32_79 = arith.constant 4 : i32
    %187 = vector.broadcast %c4_i32_79 : i32 to vector<1x60x16xi32>
    %188 = arith.cmpi slt, %145, %187 : vector<1x60x16xi32>
    %189 = arith.select %188, %184, %133 : vector<1x60x16xi1>, vector<1x60x16xf32>
    %190 = arith.select %186, %161, %189 : vector<1x60x16xi1>, vector<1x60x16xf32>
    %c0_80 = arith.constant 0 : index
    %c0_81 = arith.constant 0 : index
    %c0_82 = arith.constant 0 : index
    %191 = vector.load %arg6[%c0_80, %c0_81, %c0_82] : memref<1x60x16xf32, #tpu.memory_space<vmem>>, vector<1x60x16xf32>
    tpu.vector_store %arg6[%c0_80, %c0_81, %c0_82], %190 {strides = array<i32>} : memref<1x60x16xf32, #tpu.memory_space<vmem>>, vector<1x60x16xf32>,
    return
  }
  func.func @transform_0(%arg0: i32) -> (i32, i32, i32) {
    %c0_i32 = arith.constant 0 : i32
    %c0_i32_0 = arith.constant 0 : i32
    %c0_i32_1 = arith.constant 0 : i32
    return %arg0, %c0_i32, %c0_i32_0 : i32, i32, i32
  }
  func.func @transform_1(%arg0: i32) -> (i32, i32, i32) {
    %c0_i32 = arith.constant 0 : i32
    %c0_i32_0 = arith.constant 0 : i32
    %c0_i32_1 = arith.constant 0 : i32
    return %arg0, %c0_i32, %c0_i32_0 : i32, i32, i32
  }
  func.func @transform_2(%arg0: i32) -> (i32, i32, i32) {
    %c0_i32 = arith.constant 0 : i32
    %c0_i32_0 = arith.constant 0 : i32
    %c0_i32_1 = arith.constant 0 : i32
    return %arg0, %c0_i32, %c0_i32_0 : i32, i32, i32
  }
  func.func @transform_3(%arg0: i32) -> (i32, i32, i32) {
    %c0_i32 = arith.constant 0 : i32
    %c0_i32_0 = arith.constant 0 : i32
    %c0_i32_1 = arith.constant 0 : i32
    return %arg0, %c0_i32, %c0_i32_0 : i32, i32, i32
  }
  func.func @transform_4(%arg0: i32) -> (i32, i32, i32) {
    %c0_i32 = arith.constant 0 : i32
    %c0_i32_0 = arith.constant 0 : i32
    %c0_i32_1 = arith.constant 0 : i32
    return %arg0, %c0_i32, %c0_i32_0 : i32, i32, i32
  }
  func.func @transform_5(%arg0: i32) -> (i32, i32, i32) {
    %c0_i32 = arith.constant 0 : i32
    %c0_i32_0 = arith.constant 0 : i32
    %c0_i32_1 = arith.constant 0 : i32
    return %arg0, %c0_i32, %c0_i32_0 : i32, i32, i32
  }
}

</mosaic_0001>

<llo_original>
// kernel: tpu_custom_call.1
$region0: #{tpu_custom_call.1}
  #allocation0 [shape = 'u32[]', space=smem, size = 0x4, offset = 0x4, fixed_abs, tag = 'smem constant byte address 0x4 - core index']
  #allocation1 [shape = 'u32[144,128]{1,0:T(1,128)}', space=vmem, size = 0x12000, scoped, tag = 'internal scratch']
  %s0 = inlined_call_operand.vmem [shape: f32[2,60,256], index: 0, kind: input, shape index: {}]
  %s1 = inlined_call_operand.vmem [shape: f32[2,60,64], index: 1, kind: input, shape index: {}]
  %s2 = inlined_call_operand.vmem [shape: f32[2,60,16], index: 2, kind: input, shape index: {}]
  %s3 = inlined_call_operand.vmem [shape: f32[2,60,256], index: 3, kind: output, shape index: {0}]
  %s4 = inlined_call_operand.vmem [shape: f32[2,60,64], index: 4, kind: output, shape index: {1}]
  %s5 = inlined_call_operand.vmem [shape: f32[2,60,16], index: 5, kind: output, shape index: {2}]
  %6 = xla_tuple %s3, %s4, %s5
  %s7 = sld [smem:[#allocation0]]
  $region61: #{tpu_custom_call.1} parent=0
    _
  %s9 = ssub.s32 1, %s7
  %s10 = scalar_select 0, %s9, %s7
  loop: start=0, step=1, limit=4
  $region2: #{tpu_custom_call.1} parent=0 // loop_pre_header
    _
  $region3: #{tpu_custom_call.1} parent=0 // loop_header
    %s12 = sphi 0, %s16
    %p13 = scmp.ge.s32.totalorder %s12, 4
    %s22 = sphi 0, %s24
    %s25 = sphi 0, %s22
    %s26 = sphi 0, %s25
    %s42 = sphi 0, %s26
    %s48 = sphi 0, %s50
    %s51 = sphi 0, %s48
    %s52 = sphi 0, %s51
    %s68 = sphi 0, %s52
    %s74 = sphi 0, %s76
    %s77 = sphi 0, %s74
    %s78 = sphi 0, %s77
    %s94 = sphi 0, %s78
    %s100 = sphi 0, %s102
    %s103 = sphi 0, %s100
    %s104 = sphi 0, %s103
    %s120 = sphi 0, %s104
    %s126 = sphi 0, %s128
    %s129 = sphi 0, %s126
    %s130 = sphi 0, %s129
    %s146 = sphi 0, %s130
    %s152 = sphi 0, %s154
    %s155 = sphi 0, %s152
    %s156 = sphi 0, %s155
    %s172 = sphi 0, %s156
  $region4: #{tpu_custom_call.1} parent=0 // loop_header_branch
    %15 = sbr.rel (%p13) target = $region8
  $region5: #{tpu_custom_call.1} parent=0 // loop_body
    %s17 = ssub.s32 %s12, 1
    %s18 = ssub.s32 %s12, 2
    %s19 = sadd.s32 %s12, 1
    %s20 = ssub.s32 %s12, %s19
    %p21 = scmp.eq.s32.totalorder %s20, 0
    %s23 = sadd.s32 %s22, 1
    %s24 = scalar_select %p21, %s22, %s23
    %p27 = pneg %p21
    %p28 = scmp.eq.s32.totalorder %s12, 1
    %p29 = por %p27, %p28
    %p30 = scmp.ne.s32.totalorder %s22, %s25
    %p31 = scmp.eq.s32.totalorder %s12, 0
    %p32 = por %p30, %p31
    %p33 = scmp.ne.s32.totalorder %s22, %s25
    %p34 = scmp.eq.s32.totalorder %s17, 1
    %p35 = por %p33, %p34
    %p36 = scmp.ne.s32.totalorder %s25, %s26
    %p37 = scmp.eq.s32.totalorder %s17, 0
    %p38 = por %p36, %p37
    %p39 = scmp.ne.s32.totalorder %s25, %s26
    %p40 = scmp.eq.s32.totalorder %s18, 1
    %p41 = por %p39, %p40
    %p43 = scmp.ne.s32.totalorder %s26, %s42
    %p44 = scmp.eq.s32.totalorder %s18, 0
    %p45 = por %p43, %p44
    %s46 = ssub.s32 %s12, %s19
    %p47 = scmp.eq.s32.totalorder %s46, 0
    %s49 = sadd.s32 %s48, 1
    %s50 = scalar_select %p47, %s48, %s49
    %p53 = pneg %p47
    %p54 = scmp.eq.s32.totalorder %s12, 1
    %p55 = por %p53, %p54
    %p56 = scmp.ne.s32.totalorder %s48, %s51
    %p57 = scmp.eq.s32.totalorder %s12, 0
    %p58 = por %p56, %p57
    %p59 = scmp.ne.s32.totalorder %s48, %s51
    %p60 = scmp.eq.s32.totalorder %s17, 1
    %p61 = por %p59, %p60
    %p62 = scmp.ne.s32.totalorder %s51, %s52
    %p63 = scmp.eq.s32.totalorder %s17, 0
    %p64 = por %p62, %p63
    %p65 = scmp.ne.s32.totalorder %s51, %s52
    %p66 = scmp.eq.s32.totalorder %s18, 1
    %p67 = por %p65, %p66
    %p69 = scmp.ne.s32.totalorder %s52, %s68
    %p70 = scmp.eq.s32.totalorder %s18, 0
    %p71 = por %p69, %p70
    %s72 = ssub.s32 %s12, %s19
    %p73 = scmp.eq.s32.totalorder %s72, 0
    %s75 = sadd.s32 %s74, 1
    %s76 = scalar_select %p73, %s74, %s75
    %p79 = pneg %p73
    %p80 = scmp.eq.s32.totalorder %s12, 1
    %p81 = por %p79, %p80
    %p82 = scmp.ne.s32.totalorder %s74, %s77
    %p83 = scmp.eq.s32.totalorder %s12, 0
    %p84 = por %p82, %p83
    %p85 = scmp.ne.s32.totalorder %s74, %s77
    %p86 = scmp.eq.s32.totalorder %s17, 1
    %p87 = por %p85, %p86
    %p88 = scmp.ne.s32.totalorder %s77, %s78
    %p89 = scmp.eq.s32.totalorder %s17, 0
    %p90 = por %p88, %p89
    %p91 = scmp.ne.s32.totalorder %s77, %s78
    %p92 = scmp.eq.s32.totalorder %s18, 1
    %p93 = por %p91, %p92
    %p95 = scmp.ne.s32.totalorder %s78, %s94
    %p96 = scmp.eq.s32.totalorder %s18, 0
    %p97 = por %p95, %p96
    %s98 = ssub.s32 %s12, %s19
    %p99 = scmp.eq.s32.totalorder %s98, 0
    %s101 = sadd.s32 %s100, 1
    %s102 = scalar_select %p99, %s100, %s101
    %p105 = pneg %p99
    %p106 = scmp.eq.s32.totalorder %s12, 1
    %p107 = por %p105, %p106
    %p108 = scmp.ne.s32.totalorder %s100, %s103
    %p109 = scmp.eq.s32.totalorder %s12, 0
    %p110 = por %p108, %p109
    %p111 = scmp.ne.s32.totalorder %s100, %s103
    %p112 = scmp.eq.s32.totalorder %s17, 1
    %p113 = por %p111, %p112
    %p114 = scmp.ne.s32.totalorder %s103, %s104
    %p115 = scmp.eq.s32.totalorder %s17, 0
    %p116 = por %p114, %p115
    %p117 = scmp.ne.s32.totalorder %s103, %s104
    %p118 = scmp.eq.s32.totalorder %s18, 1
    %p119 = por %p117, %p118
    %p121 = scmp.ne.s32.totalorder %s104, %s120
    %p122 = scmp.eq.s32.totalorder %s18, 0
    %p123 = por %p121, %p122
    %s124 = ssub.s32 %s12, %s19
    %p125 = scmp.eq.s32.totalorder %s124, 0
    %s127 = sadd.s32 %s126, 1
    %s128 = scalar_select %p125, %s126, %s127
    %p131 = pneg %p125
    %p132 = scmp.eq.s32.totalorder %s12, 1
    %p133 = por %p131, %p132
    %p134 = scmp.ne.s32.totalorder %s126, %s129
    %p135 = scmp.eq.s32.totalorder %s12, 0
    %p136 = por %p134, %p135
    %p137 = scmp.ne.s32.totalorder %s126, %s129
    %p138 = scmp.eq.s32.totalorder %s17, 1
    %p139 = por %p137, %p138
    %p140 = scmp.ne.s32.totalorder %s129, %s130
    %p141 = scmp.eq.s32.totalorder %s17, 0
    %p142 = por %p140, %p141
    %p143 = scmp.ne.s32.totalorder %s129, %s130
    %p144 = scmp.eq.s32.totalorder %s18, 1
    %p145 = por %p143, %p144
    %p147 = scmp.ne.s32.totalorder %s130, %s146
    %p148 = scmp.eq.s32.totalorder %s18, 0
    %p149 = por %p147, %p148
    %s150 = ssub.s32 %s12, %s19
    %p151 = scmp.eq.s32.totalorder %s150, 0
    %s153 = sadd.s32 %s152, 1
    %s154 = scalar_select %p151, %s152, %s153
    %p157 = pneg %p151
    %p158 = scmp.eq.s32.totalorder %s12, 1
    %p159 = por %p157, %p158
    %p160 = scmp.ne.s32.totalorder %s152, %s155
    %p161 = scmp.eq.s32.totalorder %s12, 0
    %p162 = por %p160, %p161
    %p163 = scmp.ne.s32.totalorder %s152, %s155
    %p164 = scmp.eq.s32.totalorder %s17, 1
    %p165 = por %p163, %p164
    %p166 = scmp.ne.s32.totalorder %s155, %s156
    %p167 = scmp.eq.s32.totalorder %s17, 0
    %p168 = por %p166, %p167
    %p169 = scmp.ne.s32.totalorder %s155, %s156
    %p170 = scmp.eq.s32.totalorder %s18, 1
    %p171 = por %p169, %p170
    %p173 = scmp.ne.s32.totalorder %s156, %s172
    %p174 = scmp.eq.s32.totalorder %s18, 0
    %p175 = por %p173, %p174
    %p176 = scmp.le.s32.totalorder 1, %s12
    %p177 = scmp.lt.s32.totalorder %s12, 3
    %p178 = pnand %p176, %p177
    %p179 = pneg %p178
    // Predicated region
    $region9: #{tpu_custom_call.1} parent=5 // pred_check
      _
    $region10: #{tpu_custom_call.1} parent=5 // pred_check_branch
      %181 = sbr.rel (%p178) target = $region12
    $region11: #{tpu_custom_call.1} parent=5 // pred_region
      %s182 = ssub.s32 %s12, 1
    $region12: #{tpu_custom_call.1} parent=5 // pred_fallthru
      _
    %p183 = scmp.lt.s32.totalorder %s12, 2
    // Predicated region
    $region13: #{tpu_custom_call.1} parent=5 // pred_check
      %p184 = pneg %p183
    $region14: #{tpu_custom_call.1} parent=5 // pred_check_branch
      %186 = sbr.rel (%p184) target = $region16
    $region15: #{tpu_custom_call.1} parent=5 // pred_region
      // Predicated region
      $region17: #{tpu_custom_call.1} parent=15 // pred_check
        %p187 = pneg %p32
      $region18: #{tpu_custom_call.1} parent=15 // pred_check_branch
        %189 = sbr.rel (%p187) target = $region20
      $region19: #{tpu_custom_call.1} parent=15 // pred_region
        %p190 = scmp.lt.s32.totalorder %s12, 1
        %s191 = scalar_select %p190, %s12, 1
        %s192 = smul.addr %s191, 16
        %s193 = smul.addr %s192, 8
        %s194 = scalar_lea.vmem %s0, %s193
      $region20: #{tpu_custom_call.1} parent=15 // pred_fallthru
        _
      // Predicated region
      $region21: #{tpu_custom_call.1} parent=15 // pred_check
        %p195 = pneg %p58
      $region22: #{tpu_custom_call.1} parent=15 // pred_check_branch
        %197 = sbr.rel (%p195) target = $region24
      $region23: #{tpu_custom_call.1} parent=15 // pred_region
        %p198 = scmp.lt.s32.totalorder %s12, 1
        %s199 = scalar_select %p198, %s12, 1
        %s200 = smul.addr %s199, 8
        %s201 = smul.addr %s200, 8
        %s202 = scalar_lea.vmem %s1, %s201
      $region24: #{tpu_custom_call.1} parent=15 // pred_fallthru
        _
      // Predicated region
      $region25: #{tpu_custom_call.1} parent=15 // pred_check
        %p203 = pneg %p84
      $region26: #{tpu_custom_call.1} parent=15 // pred_check_branch
        %205 = sbr.rel (%p203) target = $region28
      $region27: #{tpu_custom_call.1} parent=15 // pred_region
        %p206 = scmp.lt.s32.totalorder %s12, 1
        %s207 = scalar_select %p206, %s12, 1
        %s208 = smul.addr %s207, 8
        %s209 = smul.addr %s208, 8
        %s210 = scalar_lea.vmem %s2, %s209
      $region28: #{tpu_custom_call.1} parent=15 // pred_fallthru
        _
    $region16: #{tpu_custom_call.1} parent=5 // pred_fallthru
      _
    %p211 = scmp.le.s32.totalorder 1, %s12
    %p212 = scmp.lt.s32.totalorder %s12, 3
    %p213 = pnand %p211, %p212
    %p214 = pneg %p213
    // Predicated region
    $region29: #{tpu_custom_call.1} parent=5 // pred_check
      _
    $region30: #{tpu_custom_call.1} parent=5 // pred_check_branch
      %216 = sbr.rel (%p213) target = $region32
    $region31: #{tpu_custom_call.1} parent=5 // pred_region
      %s217 = ssub.s32 %s12, 1
      %p218 = scmp.lt.s32.totalorder %s17, 1
      %s219 = scalar_select %p218, %s17, 1
      %s220 = smul.addr %s219, 16
      %s221 = smul.addr %s220, 8
      %s222 = scalar_lea.vmem %s0, %s221
      %p223 = pneg %p38
      %p224 = pneg %p35
      %p225 = scmp.lt.s32.totalorder %s17, 1
      %s226 = scalar_select %p225, %s17, 1
      %s227 = smul.addr %s226, 8
      %s228 = smul.addr %s227, 8
      %s229 = scalar_lea.vmem %s1, %s228
      %p230 = pneg %p64
      %p231 = pneg %p61
      %p232 = scmp.lt.s32.totalorder %s17, 1
      %s233 = scalar_select %p232, %s17, 1
      %s234 = smul.addr %s233, 8
      %s235 = smul.addr %s234, 8
      %s236 = scalar_lea.vmem %s2, %s235
      %p237 = pneg %p90
      %p238 = pneg %p87
      %p239 = pneg %p116
      %p240 = pneg %p113
      %p241 = scmp.lt.s32.totalorder %s17, 1
      %s242 = scalar_select %p241, %s17, 1
      %s243 = smul.addr %s242, 16
      %s244 = smul.addr %s243, 8
      %s245 = scalar_lea.vmem %s3, %s244
      %p246 = pneg %p142
      %p247 = pneg %p139
      %p248 = scmp.lt.s32.totalorder %s17, 1
      %s249 = scalar_select %p248, %s17, 1
      %s250 = smul.addr %s249, 8
      %s251 = smul.addr %s250, 8
      %s252 = scalar_lea.vmem %s4, %s251
      %p253 = pneg %p168
      %p254 = pneg %p165
      %p255 = scmp.lt.s32.totalorder %s17, 1
      %s256 = scalar_select %p255, %s17, 1
      %s257 = smul.addr %s256, 8
      %s258 = smul.addr %s257, 8
      %s259 = scalar_lea.vmem %s5, %s258
      %p260 = scmp.lt.s32.totalorder %s17, 1
      %s261 = scalar_select %p260, %s17, 1
      %s262 = smul.addr %s261, 16
      %s263 = smul.addr %s262, 8
      %s264 = scalar_lea.vmem %s0, %s263
      %p265 = scmp.lt.s32.totalorder %s17, 1
      %s266 = scalar_select %p265, %s17, 1
      %s267 = smul.addr %s266, 8
      %s268 = smul.addr %s267, 8
      %s269 = scalar_lea.vmem %s1, %s268
      %p270 = scmp.lt.s32.totalorder %s17, 1
      %s271 = scalar_select %p270, %s17, 1
      %s272 = smul.addr %s271, 8
      %s273 = smul.addr %s272, 8
      %s274 = scalar_lea.vmem %s2, %s273
      %p275 = scmp.lt.s32.totalorder %s17, 1
      %s276 = scalar_select %p275, %s17, 1
      %s277 = smul.addr %s276, 16
      %s278 = smul.addr %s277, 8
      %s279 = scalar_lea.vmem %s3, %s278
      %p280 = scmp.lt.s32.totalorder %s17, 1
      %s281 = scalar_select %p280, %s17, 1
      %s282 = smul.addr %s281, 8
      %s283 = smul.addr %s282, 8
      %s284 = scalar_lea.vmem %s4, %s283
      %p285 = scmp.lt.s32.totalorder %s17, 1
      %s286 = scalar_select %p285, %s17, 1
      %s287 = smul.addr %s286, 8
      %s288 = smul.addr %s287, 8
      %s289 = scalar_lea.vmem %s5, %s288
      %v290 = vld [vmem:[%s264] sm:$0xff]
      %v291 = vld [vmem:[%s264 + $0x8] sm:$0xff]
      %v292 = vld [vmem:[%s264 + $0x10] sm:$0xff]
      %v293 = vld [vmem:[%s264 + $0x18] sm:$0xff]
      %v294 = vld [vmem:[%s264 + $0x20] sm:$0xff]
      %v295 = vld [vmem:[%s264 + $0x28] sm:$0xff]
      %v296 = vld [vmem:[%s264 + $0x30] sm:$0xff]
      %v297 = vld [vmem:[%s264 + $0x38] sm:$0xff]
      %v298 = vld [vmem:[%s264 + $0x40] sm:$0xff]
      %v299 = vld [vmem:[%s264 + $0x48] sm:$0xff]
      %v300 = vld [vmem:[%s264 + $0x50] sm:$0xff]
      %v301 = vld [vmem:[%s264 + $0x58] sm:$0xff]
      %v302 = vld [vmem:[%s264 + $0x60] sm:$0xff]
      %v303 = vld [vmem:[%s264 + $0x68] sm:$0xff]
      %v304 = vld [vmem:[%s264 + $0x70] sm:$0xf]
      %v305 = vld [vmem:[%s264 + $0x78] sm:$0xf]
      %v306 = vxor.u32 %v290, 2147483648
      %v307 = vxor.u32 %v291, 2147483648
      %v308 = vxor.u32 %v292, 2147483648
      %v309 = vxor.u32 %v293, 2147483648
      %v310 = vxor.u32 %v294, 2147483648
      %v311 = vxor.u32 %v295, 2147483648
      %v312 = vxor.u32 %v296, 2147483648
      %v313 = vxor.u32 %v297, 2147483648
      %v314 = vxor.u32 %v298, 2147483648
      %v315 = vxor.u32 %v299, 2147483648
      %v316 = vxor.u32 %v300, 2147483648
      %v317 = vxor.u32 %v301, 2147483648
      %v318 = vxor.u32 %v302, 2147483648
      %v319 = vxor.u32 %v303, 2147483648
      %v320 = vxor.u32 %v304, 2147483648
      %v321 = vxor.u32 %v305, 2147483648
      %v322 = vmul.f32 %v306, 1.442695
      %v323 = vpow.pop %v322
      %v324 = vmul.f32 %v307, 1.442695
      %v325 = vpow.pop %v324
      %v326 = vmul.f32 %v308, 1.442695
      %v327 = vpow.pop %v326
      %v328 = vmul.f32 %v309, 1.442695
      %v329 = vpow.pop %v328
      %v330 = vmul.f32 %v310, 1.442695
      %v331 = vpow.pop %v330
      %v332 = vmul.f32 %v311, 1.442695
      %v333 = vpow.pop %v332
      %v334 = vmul.f32 %v312, 1.442695
      %v335 = vpow.pop %v334
      %v336 = vmul.f32 %v313, 1.442695
      %v337 = vpow.pop %v336
      %v338 = vmul.f32 %v314, 1.442695
      %v339 = vpow.pop %v338
      %v340 = vmul.f32 %v315, 1.442695
      %v341 = vpow.pop %v340
      %v342 = vmul.f32 %v316, 1.442695
      %v343 = vpow.pop %v342
      %v344 = vmul.f32 %v317, 1.442695
      %v345 = vpow.pop %v344
      %v346 = vmul.f32 %v318, 1.442695
      %v347 = vpow.pop %v346
      %v348 = vmul.f32 %v319, 1.442695
      %v349 = vpow.pop %v348
      %v350 = vmul.f32 %v320, 1.442695
      %v351 = vpow.pop %v350
      %v352 = vmul.f32 %v321, 1.442695
      %v353 = vpow.pop %v352
      %v354 = vadd.f32 %v323, 1.0
      %v355 = vadd.f32 %v325, 1.0
      %v356 = vadd.f32 %v327, 1.0
      %v357 = vadd.f32 %v329, 1.0
      %v358 = vadd.f32 %v331, 1.0
      %v359 = vadd.f32 %v333, 1.0
      %v360 = vadd.f32 %v335, 1.0
      %v361 = vadd.f32 %v337, 1.0
      %v362 = vadd.f32 %v339, 1.0
      %v363 = vadd.f32 %v341, 1.0
      %v364 = vadd.f32 %v343, 1.0
      %v365 = vadd.f32 %v345, 1.0
      %v366 = vadd.f32 %v347, 1.0
      %v367 = vadd.f32 %v349, 1.0
      %v368 = vadd.f32 %v351, 1.0
      %v369 = vadd.f32 %v353, 1.0
      %v370 = vrcp.pop %v354
      %v371 = vmul.f32 1.0, %v370
      %v372 = vrcp.pop %v355
      %v373 = vmul.f32 1.0, %v372
      %v374 = vrcp.pop %v356
      %v375 = vmul.f32 1.0, %v374
      %v376 = vrcp.pop %v357
      %v377 = vmul.f32 1.0, %v376
      %v378 = vrcp.pop %v358
      %v379 = vmul.f32 1.0, %v378
      %v380 = vrcp.pop %v359
      %v381 = vmul.f32 1.0, %v380
      %v382 = vrcp.pop %v360
      %v383 = vmul.f32 1.0, %v382
      %v384 = vrcp.pop %v361
      %v385 = vmul.f32 1.0, %v384
      %v386 = vrcp.pop %v362
      %v387 = vmul.f32 1.0, %v386
      %v388 = vrcp.pop %v363
      %v389 = vmul.f32 1.0, %v388
      %v390 = vrcp.pop %v364
      %v391 = vmul.f32 1.0, %v390
      %v392 = vrcp.pop %v365
      %v393 = vmul.f32 1.0, %v392
      %v394 = vrcp.pop %v366
      %v395 = vmul.f32 1.0, %v394
      %v396 = vrcp.pop %v367
      %v397 = vmul.f32 1.0, %v396
      %v398 = vrcp.pop %v368
      %v399 = vmul.f32 1.0, %v398
      %v400 = vrcp.pop %v369
      %v401 = vmul.f32 1.0, %v400
      %v402 = vlaneseq
      %v403 = vshrl.u32 %v402, 7
      %v404 = vadd.s32 %v403, 8
      %v405 = vadd.s32 %v403, 16
      %v406 = vadd.s32 %v403, 24
      %v407 = vadd.s32 %v403, 32
      %v408 = vadd.s32 %v403, 40
      %v409 = vadd.s32 %v403, 48
      %v410 = vadd.s32 %v403, 56
      %v411 = vlaneseq
      %v412 = vand.u32 %v411, 127
      %v413 = vadd.s32 %v412, 128
      %vm414 = vcmp.lt.s32.totalorder %v403, 20
      %vm415 = vcmp.lt.s32.totalorder %v404, 20
      %vm416 = vcmp.lt.s32.totalorder %v405, 20
      %vm417 = vcmp.lt.s32.totalorder %v406, 20
      %vm418 = vcmp.lt.s32.totalorder %v407, 20
      %vm419 = vcmp.lt.s32.totalorder %v408, 20
      %vm420 = vcmp.lt.s32.totalorder %v409, 20
      %vm421 = vcmp.lt.s32.totalorder %v410, 20
      %vm422 = vcmp.lt.s32.totalorder %v403, 40
      %vm423 = vcmp.lt.s32.totalorder %v404, 40
      %vm424 = vcmp.lt.s32.totalorder %v405, 40
      %vm425 = vcmp.lt.s32.totalorder %v406, 40
      %vm426 = vcmp.lt.s32.totalorder %v407, 40
      %vm427 = vcmp.lt.s32.totalorder %v408, 40
      %vm428 = vcmp.lt.s32.totalorder %v409, 40
      %vm429 = vcmp.lt.s32.totalorder %v410, 40
      %v430 = vsel %vm422, 20, 40
      %v431 = vsel %vm423, 20, 40
      %v432 = vsel %vm424, 20, 40
      %v433 = vsel %vm425, 20, 40
      %v434 = vsel %vm426, 20, 40
      %v435 = vsel %vm427, 20, 40
      %v436 = vsel %vm428, 20, 40
      %v437 = vsel %vm429, 20, 40
      %v438 = vsel %vm414, 0, %v430
      %v439 = vsel %vm415, 0, %v431
      %v440 = vsel %vm416, 0, %v432
      %v441 = vsel %vm417, 0, %v433
      %v442 = vsel %vm418, 0, %v434
      %v443 = vsel %vm419, 0, %v435
      %v444 = vsel %vm420, 0, %v436
      %v445 = vsel %vm421, 0, %v437
      %v446 = vsub.s32 %v403, %v438
      %v447 = vsub.s32 %v404, %v439
      %v448 = vsub.s32 %v405, %v440
      %v449 = vsub.s32 %v406, %v441
      %v450 = vsub.s32 %v407, %v442
      %v451 = vsub.s32 %v408, %v443
      %v452 = vsub.s32 %v409, %v444
      %v453 = vsub.s32 %v410, %v445
      %v454 = vshra.s32 %v412, 4
      %v455 = vshra.s32 %v413, 4
      %v456 = vand.u32 %v412, 15
      %v457 = vand.u32 %v413, 15
      %vm458 = vcmp.eq.s32.totalorder %v446, 0
      %vm459 = vcmp.eq.s32.totalorder %v447, 0
      %vm460 = vcmp.eq.s32.totalorder %v448, 0
      %vm461 = vcmp.eq.s32.totalorder %v449, 0
      %vm462 = vcmp.eq.s32.totalorder %v450, 0
      %vm463 = vcmp.eq.s32.totalorder %v451, 0
      %vm464 = vcmp.eq.s32.totalorder %v452, 0
      %vm465 = vcmp.eq.s32.totalorder %v453, 0
      %v466 = vcvt.s32.f32 %v456
      %v467 = vcvt.s32.f32 %v457
      %v468 = vcvt.s32.f32 %v454
      %v469 = vcvt.s32.f32 %v455
      %v470 = vsel %vm458, %v466, %v468
      %v471 = vsel %vm458, %v467, %v469
      %v472 = vsel %vm459, %v466, %v468
      %v473 = vsel %vm459, %v467, %v469
      %v474 = vsel %vm460, %v466, %v468
      %v475 = vsel %vm460, %v467, %v469
      %v476 = vsel %vm461, %v466, %v468
      %v477 = vsel %vm461, %v467, %v469
      %v478 = vsel %vm462, %v466, %v468
      %v479 = vsel %vm462, %v467, %v469
      %v480 = vsel %vm463, %v466, %v468
      %v481 = vsel %vm463, %v467, %v469
      %v482 = vsel %vm464, %v466, %v468
      %v483 = vsel %vm464, %v467, %v469
      %v484 = vsel %vm465, %v466, %v468
      %v485 = vsel %vm465, %v467, %v469
      %v486 = vmul.f32 %v371, 16.0
      %v487 = vmul.f32 %v373, 16.0
      %v488 = vmul.f32 %v375, 16.0
      %v489 = vmul.f32 %v377, 16.0
      %v490 = vmul.f32 %v379, 16.0
      %v491 = vmul.f32 %v381, 16.0
      %v492 = vmul.f32 %v383, 16.0
      %v493 = vmul.f32 %v385, 16.0
      %v494 = vmul.f32 %v387, 16.0
      %v495 = vmul.f32 %v389, 16.0
      %v496 = vmul.f32 %v391, 16.0
      %v497 = vmul.f32 %v393, 16.0
      %v498 = vmul.f32 %v395, 16.0
      %v499 = vmul.f32 %v397, 16.0
      %v500 = vmul.f32 %v399, 16.0
      %v501 = vmul.f32 %v401, 16.0
      %v502 = vsub.f32 %v470, 0.5
      %v503 = vsub.f32 %v471, 0.5
      %v504 = vsub.f32 %v472, 0.5
      %v505 = vsub.f32 %v473, 0.5
      %v506 = vsub.f32 %v474, 0.5
      %v507 = vsub.f32 %v475, 0.5
      %v508 = vsub.f32 %v476, 0.5
      %v509 = vsub.f32 %v477, 0.5
      %v510 = vsub.f32 %v478, 0.5
      %v511 = vsub.f32 %v479, 0.5
      %v512 = vsub.f32 %v480, 0.5
      %v513 = vsub.f32 %v481, 0.5
      %v514 = vsub.f32 %v482, 0.5
      %v515 = vsub.f32 %v483, 0.5
      %v516 = vsub.f32 %v484, 0.5
      %v517 = vsub.f32 %v485, 0.5
      %v518 = vmul.f32 %v502, 8.0
      %v519 = vmul.f32 %v503, 8.0
      %v520 = vmul.f32 %v504, 8.0
      %v521 = vmul.f32 %v505, 8.0
      %v522 = vmul.f32 %v506, 8.0
      %v523 = vmul.f32 %v507, 8.0
      %v524 = vmul.f32 %v508, 8.0
      %v525 = vmul.f32 %v509, 8.0
      %v526 = vmul.f32 %v510, 8.0
      %v527 = vmul.f32 %v511, 8.0
      %v528 = vmul.f32 %v512, 8.0
      %v529 = vmul.f32 %v513, 8.0
      %v530 = vmul.f32 %v514, 8.0
      %v531 = vmul.f32 %v515, 8.0
      %v532 = vmul.f32 %v516, 8.0
      %v533 = vmul.f32 %v517, 8.0
      %v534 = vadd.f32 %v486, %v518
      %v535 = vadd.f32 %v487, %v519
      %v536 = vadd.f32 %v488, %v520
      %v537 = vadd.f32 %v489, %v521
      %v538 = vadd.f32 %v490, %v522
      %v539 = vadd.f32 %v491, %v523
      %v540 = vadd.f32 %v492, %v524
      %v541 = vadd.f32 %v493, %v525
      %v542 = vadd.f32 %v494, %v526
      %v543 = vadd.f32 %v495, %v527
      %v544 = vadd.f32 %v496, %v528
      %v545 = vadd.f32 %v497, %v529
      %v546 = vadd.f32 %v498, %v530
      %v547 = vadd.f32 %v499, %v531
      %v548 = vadd.f32 %v500, %v532
      %v549 = vadd.f32 %v501, %v533
      %v550 = vsel %vm422, 64.0, 132.0
      %v551 = vsel %vm423, 64.0, 132.0
      %v552 = vsel %vm424, 64.0, 132.0
      %v553 = vsel %vm425, 64.0, 132.0
      %v554 = vsel %vm426, 64.0, 132.0
      %v555 = vsel %vm427, 64.0, 132.0
      %v556 = vsel %vm428, 64.0, 132.0
      %v557 = vsel %vm429, 64.0, 132.0
      %v558 = vsel %vm414, 40.0, %v550
      %v559 = vsel %vm415, 40.0, %v551
      %v560 = vsel %vm416, 40.0, %v552
      %v561 = vsel %vm417, 40.0, %v553
      %v562 = vsel %vm418, 40.0, %v554
      %v563 = vsel %vm419, 40.0, %v555
      %v564 = vsel %vm420, 40.0, %v556
      %v565 = vsel %vm421, 40.0, %v557
      %v566 = vsel %vm422, 120.0, 92.0
      %v567 = vsel %vm423, 120.0, 92.0
      %v568 = vsel %vm424, 120.0, 92.0
      %v569 = vsel %vm425, 120.0, 92.0
      %v570 = vsel %vm426, 120.0, 92.0
      %v571 = vsel %vm427, 120.0, 92.0
      %v572 = vsel %vm428, 120.0, 92.0
      %v573 = vsel %vm429, 120.0, 92.0
      %v574 = vsel %vm414, 52.0, %v566
      %v575 = vsel %vm415, 52.0, %v567
      %v576 = vsel %vm416, 52.0, %v568
      %v577 = vsel %vm417, 52.0, %v569
      %v578 = vsel %vm418, 52.0, %v570
      %v579 = vsel %vm419, 52.0, %v571
      %v580 = vsel %vm420, 52.0, %v572
      %v581 = vsel %vm421, 52.0, %v573
      %v582 = vmul.f32 %v371, %v371
      %v583 = vmul.f32 %v373, %v373
      %v584 = vmul.f32 %v375, %v375
      %v585 = vmul.f32 %v377, %v377
      %v586 = vmul.f32 %v379, %v379
      %v587 = vmul.f32 %v381, %v381
      %v588 = vmul.f32 %v383, %v383
      %v589 = vmul.f32 %v385, %v385
      %v590 = vmul.f32 %v387, %v387
      %v591 = vmul.f32 %v389, %v389
      %v592 = vmul.f32 %v391, %v391
      %v593 = vmul.f32 %v393, %v393
      %v594 = vmul.f32 %v395, %v395
      %v595 = vmul.f32 %v397, %v397
      %v596 = vmul.f32 %v399, %v399
      %v597 = vmul.f32 %v401, %v401
      %vm598 = vcmp.eq.s32.totalorder %v446, 2
      %vm599 = vcmp.eq.s32.totalorder %v447, 2
      %vm600 = vcmp.eq.s32.totalorder %v448, 2
      %vm601 = vcmp.eq.s32.totalorder %v449, 2
      %vm602 = vcmp.eq.s32.totalorder %v450, 2
      %vm603 = vcmp.eq.s32.totalorder %v451, 2
      %vm604 = vcmp.eq.s32.totalorder %v452, 2
      %vm605 = vcmp.eq.s32.totalorder %v453, 2
      %v606 = vsel %vm598, %v558, %v574
      %v607 = vsel %vm599, %v559, %v575
      %v608 = vsel %vm600, %v560, %v576
      %v609 = vsel %vm601, %v561, %v577
      %v610 = vsel %vm602, %v562, %v578
      %v611 = vsel %vm603, %v563, %v579
      %v612 = vsel %vm604, %v564, %v580
      %v613 = vsel %vm605, %v565, %v581
      %v614 = vmul.f32 %v582, %v606
      %v615 = vmul.f32 %v583, %v606
      %v616 = vmul.f32 %v584, %v607
      %v617 = vmul.f32 %v585, %v607
      %v618 = vmul.f32 %v586, %v608
      %v619 = vmul.f32 %v587, %v608
      %v620 = vmul.f32 %v588, %v609
      %v621 = vmul.f32 %v589, %v609
      %v622 = vmul.f32 %v590, %v610
      %v623 = vmul.f32 %v591, %v610
      %v624 = vmul.f32 %v592, %v611
      %v625 = vmul.f32 %v593, %v611
      %v626 = vmul.f32 %v594, %v612
      %v627 = vmul.f32 %v595, %v612
      %v628 = vmul.f32 %v596, %v613
      %v629 = vmul.f32 %v597, %v613
      %vm630 = vcmp.lt.s32.totalorder %v446, 2
      %vm631 = vcmp.lt.s32.totalorder %v447, 2
      %vm632 = vcmp.lt.s32.totalorder %v448, 2
      %vm633 = vcmp.lt.s32.totalorder %v449, 2
      %vm634 = vcmp.lt.s32.totalorder %v450, 2
      %vm635 = vcmp.lt.s32.totalorder %v451, 2
      %vm636 = vcmp.lt.s32.totalorder %v452, 2
      %vm637 = vcmp.lt.s32.totalorder %v453, 2
      %vm638 = vcmp.lt.s32.totalorder %v446, 4
      %vm639 = vcmp.lt.s32.totalorder %v447, 4
      %vm640 = vcmp.lt.s32.totalorder %v448, 4
      %vm641 = vcmp.lt.s32.totalorder %v449, 4
      %vm642 = vcmp.lt.s32.totalorder %v450, 4
      %vm643 = vcmp.lt.s32.totalorder %v451, 4
      %vm644 = vcmp.lt.s32.totalorder %v452, 4
      %vm645 = vcmp.lt.s32.totalorder %v453, 4
      %v646 = vsel %vm638, %v614, %v371
      %v647 = vsel %vm638, %v615, %v373
      %v648 = vsel %vm639, %v616, %v375
      %v649 = vsel %vm639, %v617, %v377
      %v650 = vsel %vm640, %v618, %v379
      %v651 = vsel %vm640, %v619, %v381
      %v652 = vsel %vm641, %v620, %v383
      %v653 = vsel %vm641, %v621, %v385
      %v654 = vsel %vm642, %v622, %v387
      %v655 = vsel %vm642, %v623, %v389
      %v656 = vsel %vm643, %v624, %v391
      %v657 = vsel %vm643, %v625, %v393
      %v658 = vsel %vm644, %v626, %v395
      %v659 = vsel %vm644, %v627, %v397
      %v660 = vsel %vm645, %v628, %v399
      %v661 = vsel %vm645, %v629, %v401
      %v662 = vsel %vm630, %v534, %v646
      %v663 = vsel %vm630, %v535, %v647
      %v664 = vsel %vm631, %v536, %v648
      %v665 = vsel %vm631, %v537, %v649
      %v666 = vsel %vm632, %v538, %v650
      %v667 = vsel %vm632, %v539, %v651
      %v668 = vsel %vm633, %v540, %v652
      %v669 = vsel %vm633, %v541, %v653
      %v670 = vsel %vm634, %v542, %v654
      %v671 = vsel %vm634, %v543, %v655
      %v672 = vsel %vm635, %v544, %v656
      %v673 = vsel %vm635, %v545, %v657
      %v674 = vsel %vm636, %v546, %v658
      %v675 = vsel %vm636, %v547, %v659
      %v676 = vsel %vm637, %v548, %v660
      %v677 = vsel %vm637, %v549, %v661
      %678 = vst [vmem:[%s279] sm:$0xff] %v662
      %679 = vst [vmem:[%s279 + $0x8] sm:$0xff] %v663
      %680 = vst [vmem:[%s279 + $0x10] sm:$0xff] %v664
      %681 = vst [vmem:[%s279 + $0x18] sm:$0xff] %v665
      %682 = vst [vmem:[%s279 + $0x20] sm:$0xff] %v666
      %683 = vst [vmem:[%s279 + $0x28] sm:$0xff] %v667
      %684 = vst [vmem:[%s279 + $0x30] sm:$0xff] %v668
      %685 = vst [vmem:[%s279 + $0x38] sm:$0xff] %v669
      %686 = vst [vmem:[%s279 + $0x40] sm:$0xff] %v670
      %687 = vst [vmem:[%s279 + $0x48] sm:$0xff] %v671
      %688 = vst [vmem:[%s279 + $0x50] sm:$0xff] %v672
      %689 = vst [vmem:[%s279 + $0x58] sm:$0xff] %v673
      %690 = vst [vmem:[%s279 + $0x60] sm:$0xff] %v674
      %691 = vst [vmem:[%s279 + $0x68] sm:$0xff] %v675
      %692 = vst [vmem:[%s279 + $0x70] sm:$0xf] %v676
      %693 = vst [vmem:[%s279 + $0x78] sm:$0xf] %v677
      %v694 = vld [vmem:[%s269] sm:$0xff]
      %v695 = vld [vmem:[%s269 + $0x8] sm:$0xff]
      %v696 = vld [vmem:[%s269 + $0x10] sm:$0xff]
      %v697 = vld [vmem:[%s269 + $0x18] sm:$0xff]
      %v698 = vld [vmem:[%s269 + $0x20] sm:$0xff]
      %v699 = vld [vmem:[%s269 + $0x28] sm:$0xff]
      %v700 = vld [vmem:[%s269 + $0x30] sm:$0xff]
      %v701 = vld [vmem:[%s269 + $0x38] sm:$0xf]
      %v702 = vxor.u32 %v694, 2147483648
      %v703 = vxor.u32 %v695, 2147483648
      %v704 = vxor.u32 %v696, 2147483648
      %v705 = vxor.u32 %v697, 2147483648
      %v706 = vxor.u32 %v698, 2147483648
      %v707 = vxor.u32 %v699, 2147483648
      %v708 = vxor.u32 %v700, 2147483648
      %v709 = vxor.u32 %v701, 2147483648
      %v710 = vmul.f32 %v702, 1.442695
      %v711 = vpow.pop %v710
      %v712 = vmul.f32 %v703, 1.442695
      %v713 = vpow.pop %v712
      %v714 = vmul.f32 %v704, 1.442695
      %v715 = vpow.pop %v714
      %v716 = vmul.f32 %v705, 1.442695
      %v717 = vpow.pop %v716
      %v718 = vmul.f32 %v706, 1.442695
      %v719 = vpow.pop %v718
      %v720 = vmul.f32 %v707, 1.442695
      %v721 = vpow.pop %v720
      %v722 = vmul.f32 %v708, 1.442695
      %v723 = vpow.pop %v722
      %v724 = vmul.f32 %v709, 1.442695
      %v725 = vpow.pop %v724
      %v726 = vadd.f32 %v711, 1.0
      %v727 = vadd.f32 %v713, 1.0
      %v728 = vadd.f32 %v715, 1.0
      %v729 = vadd.f32 %v717, 1.0
      %v730 = vadd.f32 %v719, 1.0
      %v731 = vadd.f32 %v721, 1.0
      %v732 = vadd.f32 %v723, 1.0
      %v733 = vadd.f32 %v725, 1.0
      %v734 = vrcp.pop %v726
      %v735 = vmul.f32 1.0, %v734
      %v736 = vrcp.pop %v727
      %v737 = vmul.f32 1.0, %v736
      %v738 = vrcp.pop %v728
      %v739 = vmul.f32 1.0, %v738
      %v740 = vrcp.pop %v729
      %v741 = vmul.f32 1.0, %v740
      %v742 = vrcp.pop %v730
      %v743 = vmul.f32 1.0, %v742
      %v744 = vrcp.pop %v731
      %v745 = vmul.f32 1.0, %v744
      %v746 = vrcp.pop %v732
      %v747 = vmul.f32 1.0, %v746
      %v748 = vrcp.pop %v733
      %v749 = vmul.f32 1.0, %v748
      %v750 = vshra.s32 %v412, 3
      %v751 = vand.u32 %v412, 7
      %v752 = vcvt.s32.f32 %v751
      %v753 = vcvt.s32.f32 %v750
      %v754 = vsel %vm458, %v752, %v753
      %v755 = vsel %vm459, %v752, %v753
      %v756 = vsel %vm460, %v752, %v753
      %v757 = vsel %vm461, %v752, %v753
      %v758 = vsel %vm462, %v752, %v753
      %v759 = vsel %vm463, %v752, %v753
      %v760 = vsel %vm464, %v752, %v753
      %v761 = vsel %vm465, %v752, %v753
      %v762 = vmul.f32 %v735, 32.0
      %v763 = vmul.f32 %v737, 32.0
      %v764 = vmul.f32 %v739, 32.0
      %v765 = vmul.f32 %v741, 32.0
      %v766 = vmul.f32 %v743, 32.0
      %v767 = vmul.f32 %v745, 32.0
      %v768 = vmul.f32 %v747, 32.0
      %v769 = vmul.f32 %v749, 32.0
      %v770 = vsub.f32 %v754, 0.5
      %v771 = vsub.f32 %v755, 0.5
      %v772 = vsub.f32 %v756, 0.5
      %v773 = vsub.f32 %v757, 0.5
      %v774 = vsub.f32 %v758, 0.5
      %v775 = vsub.f32 %v759, 0.5
      %v776 = vsub.f32 %v760, 0.5
      %v777 = vsub.f32 %v761, 0.5
      %v778 = vmul.f32 %v770, 16.0
      %v779 = vmul.f32 %v771, 16.0
      %v780 = vmul.f32 %v772, 16.0
      %v781 = vmul.f32 %v773, 16.0
      %v782 = vmul.f32 %v774, 16.0
      %v783 = vmul.f32 %v775, 16.0
      %v784 = vmul.f32 %v776, 16.0
      %v785 = vmul.f32 %v777, 16.0
      %v786 = vadd.f32 %v762, %v778
      %v787 = vadd.f32 %v763, %v779
      %v788 = vadd.f32 %v764, %v780
      %v789 = vadd.f32 %v765, %v781
      %v790 = vadd.f32 %v766, %v782
      %v791 = vadd.f32 %v767, %v783
      %v792 = vadd.f32 %v768, %v784
      %v793 = vadd.f32 %v769, %v785
      %v794 = vsel %vm422, 248.0, 236.0
      %v795 = vsel %vm423, 248.0, 236.0
      %v796 = vsel %vm424, 248.0, 236.0
      %v797 = vsel %vm425, 248.0, 236.0
      %v798 = vsel %vm426, 248.0, 236.0
      %v799 = vsel %vm427, 248.0, 236.0
      %v800 = vsel %vm428, 248.0, 236.0
      %v801 = vsel %vm429, 248.0, 236.0
      %v802 = vsel %vm414, 120.0, %v794
      %v803 = vsel %vm415, 120.0, %v795
      %v804 = vsel %vm416, 120.0, %v796
      %v805 = vsel %vm417, 120.0, %v797
      %v806 = vsel %vm418, 120.0, %v798
      %v807 = vsel %vm419, 120.0, %v799
      %v808 = vsel %vm420, 120.0, %v800
      %v809 = vsel %vm421, 120.0, %v801
      %v810 = vsel %vm422, 180.0, 476.0
      %v811 = vsel %vm423, 180.0, 476.0
      %v812 = vsel %vm424, 180.0, 476.0
      %v813 = vsel %vm425, 180.0, 476.0
      %v814 = vsel %vm426, 180.0, 476.0
      %v815 = vsel %vm427, 180.0, 476.0
      %v816 = vsel %vm428, 180.0, 476.0
      %v817 = vsel %vm429, 180.0, 476.0
      %v818 = vsel %vm414, 244.0, %v810
      %v819 = vsel %vm415, 244.0, %v811
      %v820 = vsel %vm416, 244.0, %v812
      %v821 = vsel %vm417, 244.0, %v813
      %v822 = vsel %vm418, 244.0, %v814
      %v823 = vsel %vm419, 244.0, %v815
      %v824 = vsel %vm420, 244.0, %v816
      %v825 = vsel %vm421, 244.0, %v817
      %v826 = vmul.f32 %v735, %v735
      %v827 = vmul.f32 %v737, %v737
      %v828 = vmul.f32 %v739, %v739
      %v829 = vmul.f32 %v741, %v741
      %v830 = vmul.f32 %v743, %v743
      %v831 = vmul.f32 %v745, %v745
      %v832 = vmul.f32 %v747, %v747
      %v833 = vmul.f32 %v749, %v749
      %v834 = vsel %vm598, %v802, %v818
      %v835 = vsel %vm599, %v803, %v819
      %v836 = vsel %vm600, %v804, %v820
      %v837 = vsel %vm601, %v805, %v821
      %v838 = vsel %vm602, %v806, %v822
      %v839 = vsel %vm603, %v807, %v823
      %v840 = vsel %vm604, %v808, %v824
      %v841 = vsel %vm605, %v809, %v825
      %v842 = vmul.f32 %v826, %v834
      %v843 = vmul.f32 %v827, %v835
      %v844 = vmul.f32 %v828, %v836
      %v845 = vmul.f32 %v829, %v837
      %v846 = vmul.f32 %v830, %v838
      %v847 = vmul.f32 %v831, %v839
      %v848 = vmul.f32 %v832, %v840
      %v849 = vmul.f32 %v833, %v841
      %v850 = vsel %vm638, %v842, %v735
      %v851 = vsel %vm639, %v843, %v737
      %v852 = vsel %vm640, %v844, %v739
      %v853 = vsel %vm641, %v845, %v741
      %v854 = vsel %vm642, %v846, %v743
      %v855 = vsel %vm643, %v847, %v745
      %v856 = vsel %vm644, %v848, %v747
      %v857 = vsel %vm645, %v849, %v749
      %v858 = vsel %vm630, %v786, %v850
      %v859 = vsel %vm631, %v787, %v851
      %v860 = vsel %vm632, %v788, %v852
      %v861 = vsel %vm633, %v789, %v853
      %v862 = vsel %vm634, %v790, %v854
      %v863 = vsel %vm635, %v791, %v855
      %v864 = vsel %vm636, %v792, %v856
      %v865 = vsel %vm637, %v793, %v857
      %vm866 = vcmask 523264
      %867 = vst.msk [vmem:[%s284] sm:$0xff] %vm866, %v858
      %868 = vst.msk [vmem:[%s284 + $0x8] sm:$0xff] %vm866, %v859
      %869 = vst.msk [vmem:[%s284 + $0x10] sm:$0xff] %vm866, %v860
      %870 = vst.msk [vmem:[%s284 + $0x18] sm:$0xff] %vm866, %v861
      %871 = vst.msk [vmem:[%s284 + $0x20] sm:$0xff] %vm866, %v862
      %872 = vst.msk [vmem:[%s284 + $0x28] sm:$0xff] %vm866, %v863
      %873 = vst.msk [vmem:[%s284 + $0x30] sm:$0xff] %vm866, %v864
      %vm874 = vcmask 519168
      %875 = vst.msk [vmem:[%s284 + $0x38] sm:$0xf] %vm874, %v865
      %v876 = vld [vmem:[%s274] sm:$0xff]
      %v877 = vld [vmem:[%s274 + $0x8] sm:$0xff]
      %v878 = vld [vmem:[%s274 + $0x10] sm:$0xff]
      %v879 = vld [vmem:[%s274 + $0x18] sm:$0xff]
      %v880 = vld [vmem:[%s274 + $0x20] sm:$0xff]
      %v881 = vld [vmem:[%s274 + $0x28] sm:$0xff]
      %v882 = vld [vmem:[%s274 + $0x30] sm:$0xff]
      %v883 = vld [vmem:[%s274 + $0x38] sm:$0xf]
      %v884 = vxor.u32 %v876, 2147483648
      %v885 = vxor.u32 %v877, 2147483648
      %v886 = vxor.u32 %v878, 2147483648
      %v887 = vxor.u32 %v879, 2147483648
      %v888 = vxor.u32 %v880, 2147483648
      %v889 = vxor.u32 %v881, 2147483648
      %v890 = vxor.u32 %v882, 2147483648
      %v891 = vxor.u32 %v883, 2147483648
      %v892 = vmul.f32 %v884, 1.442695
      %v893 = vpow.pop %v892
      %v894 = vmul.f32 %v885, 1.442695
      %v895 = vpow.pop %v894
      %v896 = vmul.f32 %v886, 1.442695
      %v897 = vpow.pop %v896
      %v898 = vmul.f32 %v887, 1.442695
      %v899 = vpow.pop %v898
      %v900 = vmul.f32 %v888, 1.442695
      %v901 = vpow.pop %v900
      %v902 = vmul.f32 %v889, 1.442695
      %v903 = vpow.pop %v902
      %v904 = vmul.f32 %v890, 1.442695
      %v905 = vpow.pop %v904
      %v906 = vmul.f32 %v891, 1.442695
      %v907 = vpow.pop %v906
      %v908 = vadd.f32 %v893, 1.0
      %v909 = vadd.f32 %v895, 1.0
      %v910 = vadd.f32 %v897, 1.0
      %v911 = vadd.f32 %v899, 1.0
      %v912 = vadd.f32 %v901, 1.0
      %v913 = vadd.f32 %v903, 1.0
      %v914 = vadd.f32 %v905, 1.0
      %v915 = vadd.f32 %v907, 1.0
      %v916 = vrcp.pop %v908
      %v917 = vmul.f32 1.0, %v916
      %v918 = vrcp.pop %v909
      %v919 = vmul.f32 1.0, %v918
      %v920 = vrcp.pop %v910
      %v921 = vmul.f32 1.0, %v920
      %v922 = vrcp.pop %v911
      %v923 = vmul.f32 1.0, %v922
      %v924 = vrcp.pop %v912
      %v925 = vmul.f32 1.0, %v924
      %v926 = vrcp.pop %v913
      %v927 = vmul.f32 1.0, %v926
      %v928 = vrcp.pop %v914
      %v929 = vmul.f32 1.0, %v928
      %v930 = vrcp.pop %v915
      %v931 = vmul.f32 1.0, %v930
      %v932 = vshra.s32 %v412, 2
      %v933 = vand.u32 %v412, 3
      %v934 = vcvt.s32.f32 %v933
      %v935 = vcvt.s32.f32 %v932
      %v936 = vsel %vm458, %v934, %v935
      %v937 = vsel %vm459, %v934, %v935
      %v938 = vsel %vm460, %v934, %v935
      %v939 = vsel %vm461, %v934, %v935
      %v940 = vsel %vm462, %v934, %v935
      %v941 = vsel %vm463, %v934, %v935
      %v942 = vsel %vm464, %v934, %v935
      %v943 = vsel %vm465, %v934, %v935
      %v944 = vmul.f32 %v917, 64.0
      %v945 = vmul.f32 %v919, 64.0
      %v946 = vmul.f32 %v921, 64.0
      %v947 = vmul.f32 %v923, 64.0
      %v948 = vmul.f32 %v925, 64.0
      %v949 = vmul.f32 %v927, 64.0
      %v950 = vmul.f32 %v929, 64.0
      %v951 = vmul.f32 %v931, 64.0
      %v952 = vsub.f32 %v936, 0.5
      %v953 = vsub.f32 %v937, 0.5
      %v954 = vsub.f32 %v938, 0.5
      %v955 = vsub.f32 %v939, 0.5
      %v956 = vsub.f32 %v940, 0.5
      %v957 = vsub.f32 %v941, 0.5
      %v958 = vsub.f32 %v942, 0.5
      %v959 = vsub.f32 %v943, 0.5
      %v960 = vmul.f32 %v952, 32.0
      %v961 = vmul.f32 %v953, 32.0
      %v962 = vmul.f32 %v954, 32.0
      %v963 = vmul.f32 %v955, 32.0
      %v964 = vmul.f32 %v956, 32.0
      %v965 = vmul.f32 %v957, 32.0
      %v966 = vmul.f32 %v958, 32.0
      %v967 = vmul.f32 %v959, 32.0
      %v968 = vadd.f32 %v944, %v960
      %v969 = vadd.f32 %v945, %v961
      %v970 = vadd.f32 %v946, %v962
      %v971 = vadd.f32 %v947, %v963
      %v972 = vadd.f32 %v948, %v964
      %v973 = vadd.f32 %v949, %v965
      %v974 = vadd.f32 %v950, %v966
      %v975 = vadd.f32 %v951, %v967
      %v976 = vsel %vm422, 624.0, 1492.0
      %v977 = vsel %vm423, 624.0, 1492.0
      %v978 = vsel %vm424, 624.0, 1492.0
      %v979 = vsel %vm425, 624.0, 1492.0
      %v980 = vsel %vm426, 624.0, 1492.0
      %v981 = vsel %vm427, 624.0, 1492.0
      %v982 = vsel %vm428, 624.0, 1492.0
      %v983 = vsel %vm429, 624.0, 1492.0
      %v984 = vsel %vm414, 464.0, %v976
      %v985 = vsel %vm415, 464.0, %v977
      %v986 = vsel %vm416, 464.0, %v978
      %v987 = vsel %vm417, 464.0, %v979
      %v988 = vsel %vm418, 464.0, %v980
      %v989 = vsel %vm419, 464.0, %v981
      %v990 = vsel %vm420, 464.0, %v982
      %v991 = vsel %vm421, 464.0, %v983
      %v992 = vsel %vm422, 792.0, 1304.0
      %v993 = vsel %vm423, 792.0, 1304.0
      %v994 = vsel %vm424, 792.0, 1304.0
      %v995 = vsel %vm425, 792.0, 1304.0
      %v996 = vsel %vm426, 792.0, 1304.0
      %v997 = vsel %vm427, 792.0, 1304.0
      %v998 = vsel %vm428, 792.0, 1304.0
      %v999 = vsel %vm429, 792.0, 1304.0
      %v1000 = vsel %vm414, 360.0, %v992
      %v1001 = vsel %vm415, 360.0, %v993
      %v1002 = vsel %vm416, 360.0, %v994
      %v1003 = vsel %vm417, 360.0, %v995
      %v1004 = vsel %vm418, 360.0, %v996
      %v1005 = vsel %vm419, 360.0, %v997
      %v1006 = vsel %vm420, 360.0, %v998
      %v1007 = vsel %vm421, 360.0, %v999
      %v1008 = vmul.f32 %v917, %v917
      %v1009 = vmul.f32 %v919, %v919
      %v1010 = vmul.f32 %v921, %v921
      %v1011 = vmul.f32 %v923, %v923
      %v1012 = vmul.f32 %v925, %v925
      %v1013 = vmul.f32 %v927, %v927
      %v1014 = vmul.f32 %v929, %v929
      %v1015 = vmul.f32 %v931, %v931
      %v1016 = vsel %vm598, %v984, %v1000
      %v1017 = vsel %vm599, %v985, %v1001
      %v1018 = vsel %vm600, %v986, %v1002
      %v1019 = vsel %vm601, %v987, %v1003
      %v1020 = vsel %vm602, %v988, %v1004
      %v1021 = vsel %vm603, %v989, %v1005
      %v1022 = vsel %vm604, %v990, %v1006
      %v1023 = vsel %vm605, %v991, %v1007
      %v1024 = vmul.f32 %v1008, %v1016
      %v1025 = vmul.f32 %v1009, %v1017
      %v1026 = vmul.f32 %v1010, %v1018
      %v1027 = vmul.f32 %v1011, %v1019
      %v1028 = vmul.f32 %v1012, %v1020
      %v1029 = vmul.f32 %v1013, %v1021
      %v1030 = vmul.f32 %v1014, %v1022
      %v1031 = vmul.f32 %v1015, %v1023
      %v1032 = vsel %vm638, %v1024, %v917
      %v1033 = vsel %vm639, %v1025, %v919
      %v1034 = vsel %vm640, %v1026, %v921
      %v1035 = vsel %vm641, %v1027, %v923
      %v1036 = vsel %vm642, %v1028, %v925
      %v1037 = vsel %vm643, %v1029, %v927
      %v1038 = vsel %vm644, %v1030, %v929
      %v1039 = vsel %vm645, %v1031, %v931
      %v1040 = vsel %vm630, %v968, %v1032
      %v1041 = vsel %vm631, %v969, %v1033
      %v1042 = vsel %vm632, %v970, %v1034
      %v1043 = vsel %vm633, %v971, %v1035
      %v1044 = vsel %vm634, %v972, %v1036
      %v1045 = vsel %vm635, %v973, %v1037
      %v1046 = vsel %vm636, %v974, %v1038
      %v1047 = vsel %vm637, %v975, %v1039
      %vm1048 = vcmask 130048
      %1049 = vst.msk [vmem:[%s289] sm:$0xff] %vm1048, %v1040
      %1050 = vst.msk [vmem:[%s289 + $0x8] sm:$0xff] %vm1048, %v1041
      %1051 = vst.msk [vmem:[%s289 + $0x10] sm:$0xff] %vm1048, %v1042
      %1052 = vst.msk [vmem:[%s289 + $0x18] sm:$0xff] %vm1048, %v1043
      %1053 = vst.msk [vmem:[%s289 + $0x20] sm:$0xff] %vm1048, %v1044
      %1054 = vst.msk [vmem:[%s289 + $0x28] sm:$0xff] %vm1048, %v1045
      %1055 = vst.msk [vmem:[%s289 + $0x30] sm:$0xff] %vm1048, %v1046
      %vm1056 = vcmask 125952
      %1057 = vst.msk [vmem:[%s289 + $0x38] sm:$0xf] %vm1056, %v1047
      %p1058 = scmp.lt.s32.totalorder %s17, 1
      %s1059 = scalar_select %p1058, %s17, 1
      %s1060 = smul.addr %s1059, 16
      %s1061 = smul.addr %s1060, 8
      %s1062 = scalar_lea.vmem %s3, %s1061
      %p1063 = scmp.lt.s32.totalorder %s17, 1
      %s1064 = scalar_select %p1063, %s17, 1
      %s1065 = smul.addr %s1064, 8
      %s1066 = smul.addr %s1065, 8
      %s1067 = scalar_lea.vmem %s4, %s1066
      %p1068 = scmp.lt.s32.totalorder %s17, 1
      %s1069 = scalar_select %p1068, %s17, 1
      %s1070 = smul.addr %s1069, 8
      %s1071 = smul.addr %s1070, 8
      %s1072 = scalar_lea.vmem %s5, %s1071
      // Predicated region
      $region33: #{tpu_custom_call.1} parent=31 // pred_check
        %p1073 = pneg %p113
      $region34: #{tpu_custom_call.1} parent=31 // pred_check_branch
        %1075 = sbr.rel (%p1073) target = $region36
      $region35: #{tpu_custom_call.1} parent=31 // pred_region
        _
      $region36: #{tpu_custom_call.1} parent=31 // pred_fallthru
        _
      // Predicated region
      $region37: #{tpu_custom_call.1} parent=31 // pred_check
        %p1076 = pneg %p139
      $region38: #{tpu_custom_call.1} parent=31 // pred_check_branch
        %1078 = sbr.rel (%p1076) target = $region40
      $region39: #{tpu_custom_call.1} parent=31 // pred_region
        _
      $region40: #{tpu_custom_call.1} parent=31 // pred_fallthru
        _
      // Predicated region
      $region41: #{tpu_custom_call.1} parent=31 // pred_check
        %p1079 = pneg %p165
      $region42: #{tpu_custom_call.1} parent=31 // pred_check_branch
        %1081 = sbr.rel (%p1079) target = $region44
      $region43: #{tpu_custom_call.1} parent=31 // pred_region
        _
      $region44: #{tpu_custom_call.1} parent=31 // pred_fallthru
        _
    $region32: #{tpu_custom_call.1} parent=5 // pred_fallthru
      _
    %p1082 = scmp.le.s32.totalorder 2, %s12
    // Predicated region
    $region45: #{tpu_custom_call.1} parent=5 // pred_check
      %p1083 = pneg %p1082
    $region46: #{tpu_custom_call.1} parent=5 // pred_check_branch
      %1085 = sbr.rel (%p1083) target = $region48
    $region47: #{tpu_custom_call.1} parent=5 // pred_region
      %s1086 = ssub.s32 %s12, 2
      // Predicated region
      $region49: #{tpu_custom_call.1} parent=47 // pred_check
        %p1087 = pneg %p119
      $region50: #{tpu_custom_call.1} parent=47 // pred_check_branch
        %1089 = sbr.rel (%p1087) target = $region52
      $region51: #{tpu_custom_call.1} parent=47 // pred_region
        %p1090 = scmp.lt.s32.totalorder %s18, 1
        %s1091 = scalar_select %p1090, %s18, 1
        %s1092 = smul.addr %s1091, 16
        %s1093 = smul.addr %s1092, 8
        %s1094 = scalar_lea.vmem %s3, %s1093
      $region52: #{tpu_custom_call.1} parent=47 // pred_fallthru
        _
      // Predicated region
      $region53: #{tpu_custom_call.1} parent=47 // pred_check
        %p1095 = pneg %p145
      $region54: #{tpu_custom_call.1} parent=47 // pred_check_branch
        %1097 = sbr.rel (%p1095) target = $region56
      $region55: #{tpu_custom_call.1} parent=47 // pred_region
        %p1098 = scmp.lt.s32.totalorder %s18, 1
        %s1099 = scalar_select %p1098, %s18, 1
        %s1100 = smul.addr %s1099, 8
        %s1101 = smul.addr %s1100, 8
        %s1102 = scalar_lea.vmem %s4, %s1101
      $region56: #{tpu_custom_call.1} parent=47 // pred_fallthru
        _
      // Predicated region
      $region57: #{tpu_custom_call.1} parent=47 // pred_check
        %p1103 = pneg %p171
      $region58: #{tpu_custom_call.1} parent=47 // pred_check_branch
        %1105 = sbr.rel (%p1103) target = $region60
      $region59: #{tpu_custom_call.1} parent=47 // pred_region
        %p1106 = scmp.lt.s32.totalorder %s18, 1
        %s1107 = scalar_select %p1106, %s18, 1
        %s1108 = smul.addr %s1107, 8
        %s1109 = smul.addr %s1108, 8
        %s1110 = scalar_lea.vmem %s5, %s1109
      $region60: #{tpu_custom_call.1} parent=47 // pred_fallthru
        _
    $region48: #{tpu_custom_call.1} parent=5 // pred_fallthru
      _
  $region6: #{tpu_custom_call.1} parent=0 // loop_footer
    %s16 = sadd.s32 1, %s12
  $region7: #{tpu_custom_call.1} parent=0 // loop_footer_branch
    %11 = sbr.rel target = $region3
  $region8: #{tpu_custom_call.1} parent=0 // loop_exit
    _

</llo_original>
